<compile_context>
chip_gen: v7x
topology: tpu7x:2x2x1
jax: 0.10.0
libtpu: 0.0.40
codegen_flags: <defaults>
</compile_context>

<pallas_src>
import math

import jax
import jax.numpy as jnp
from jax.experimental import pallas as pl
from jax.experimental.pallas import tpu as pltpu

_INV_SQRT2 = 1.0 / math.sqrt(2.0)


def _mlp_kernel(x_ref, w1_ref, b1_ref, w2_ref, b2_ref, o_ref, acc_ref):
    """One (token tile, hidden slab) grid step of y = fc2(gelu(fc1(x)))."""
    k = pl.program_id(1)

    # fc1 on this hidden slab: (TM, in) @ (in, TH), f32 accumulation on MXU.
    x = x_ref[...].astype(w1_ref.dtype)          # per-tile bf16 cast (hidden under MXU)
    h = jnp.dot(x, w1_ref[...], preferred_element_type=jnp.float32)
    h = h + b1_ref[...]                          # bias in f32 (VPU)
    # exact (erf-based) GELU, matching torch.nn.GELU() default, in f32.
    # TODO(synk): optional tanh-approx / bf16 activation path (EUP) on v6e/v7x
    # if the model tolerates the numeric change.
    h = 0.5 * h * (1.0 + jax.lax.erf(h * _INV_SQRT2))
    # dropout(p=0.0) is the identity -> nothing to do.
    # fc2 partial product for this hidden slab, f32 accumulate.
    y = jnp.dot(h.astype(w2_ref.dtype), w2_ref[...],
                preferred_element_type=jnp.float32)

    @pl.when(k == 0)
    def _():
        acc_ref[...] = y

    @pl.when(k > 0)
    def _():
        acc_ref[...] += y

    @pl.when(k == pl.num_programs(1) - 1)
    def _():
        o_ref[...] = (acc_ref[...] + b2_ref[...]).astype(o_ref.dtype)


def _round_up(x, m):
    return (x + m - 1) // m * m


def _pad2d(a, rows, cols):
    pr, pc = rows - a.shape[0], cols - a.shape[1]
    if pr or pc:
        a = jnp.pad(a, ((0, pr), (0, pc)))
    return a


def _tpu_vmem_and_align():
    """Physical per-core VMEM bytes and preferred lane alignment for this chip."""
    vmem_phys = 64 << 20               # conservative default (v7x per-TC VMEM)
    try:
        info = pltpu.get_tpu_info()
        vmem_phys = int(getattr(info, "vmem_capacity_bytes", vmem_phys)) or vmem_phys
    except Exception:
        pass
    align = 128
    try:
        kind = jax.devices()[0].device_kind.lower()
        if any(tag in kind for tag in ("v6", "v7", "7x")):
            align = 256                # 2x256x256 MXU: keep hidden/out 256-aligned
    except Exception:
        pass
    return vmem_phys, align


def mlp_pallas(x, w1, b1, w2, b2, *, tm=256):
    """x: (..., in); w1: (in, hidden); w2: (hidden, out). Returns (..., out) in x.dtype."""
    *lead, in_features = x.shape
    hidden = w1.shape[1]
    out_features = w2.shape[1]

    n_tokens = 1
    for d in lead:
        n_tokens *= d
    x2d = x.reshape(n_tokens, in_features)

    vmem_phys, align = _tpu_vmem_and_align()
    vmem_budget = int(vmem_phys * 0.8)       # ~51 MiB on v7x, ~102 MiB on v5e/v6e

    # Lane-dense feature dims.
    in_p = _round_up(max(in_features, 128), 128)
    hid_p = _round_up(max(hidden, align), align)
    out_p = _round_up(max(out_features, align), align)

    # Token tile: 256-wide for real workloads; for small N aim for >=2 grid
    # points (v7x megacore) and keep a multiple of 16 (bf16 sublane packing).
    if n_tokens >= tm:
        TM = tm
    else:
        TM = _round_up(max(pl.cdiv(n_tokens, 2), 16), 16)
        TM = min(TM, _round_up(n_tokens, 16))
    gi = pl.cdiv(n_tokens, TM)

    out_dtype = x.dtype
    x_bytes = x.dtype.itemsize
    o_bytes = jnp.dtype(out_dtype).itemsize
    bf16, f32 = 2, 4

    def vmem_needed(th):
        # Conservative: assume every streamed operand is double-buffered.
        return (
            2 * TM * in_p * x_bytes          # x tiles (native dtype)
            + 2 * TM * out_p * o_bytes       # out tiles (actual output dtype)
            + 2 * in_p * th * bf16           # w1 tiles
            + 2 * th * out_p * bf16          # w2 tiles
            + 2 * 8 * th * f32               # b1 (sublane padded)
            + 2 * 8 * out_p * f32            # b2
            + TM * out_p * f32               # f32 accumulator scratch
            + TM * th * (f32 + bf16)         # h (f32) + bf16 recast
            + TM * in_p * bf16               # in-kernel x bf16 cast
            + TM * out_p * f32               # fc2 partial before accumulate
        )

    # Hidden slab: the largest multiple of `align` dividing hid_p that keeps
    # the working set inside the VMEM budget.  Collapses to the full hidden
    # dim (resident weights) whenever everything fits.
    TH = align
    max_k = hid_p // align
    for k in range(1, max_k + 1):
        if hid_p % k:
            continue
        th = hid_p // k
        if th % align:
            continue
        if vmem_needed(th) <= vmem_budget:
            TH = th
            break
    nk = hid_p // TH

    # Pad / cast the (small) weights once per call; these become no-ops if the
    # caller pre-pads/pre-casts.  x keeps its native dtype, only its feature
    # dim is zero-padded (no-op when in_features is already a multiple of 128).
    x_p = _pad2d(x2d, n_tokens, in_p)
    w1_p = _pad2d(w1, in_p, hid_p).astype(jnp.bfloat16)
    w2_p = _pad2d(w2, hid_p, out_p).astype(jnp.bfloat16)
    b1_p = _pad2d(b1.reshape(1, hidden).astype(jnp.float32), 1, hid_p)
    b2_p = _pad2d(b2.reshape(1, out_features).astype(jnp.float32), 1, out_p)

    w_reads = 1 if nk == 1 else gi            # weights re-streamed per token tile if split
    cost = pl.CostEstimate(
        flops=int(2 * n_tokens * (in_p * hid_p + hid_p * out_p)),
        transcendentals=int(n_tokens * hid_p),
        bytes_accessed=int(
            n_tokens * in_p * x_bytes
            + w_reads * (in_p * hid_p + hid_p * out_p) * bf16
            + (hid_p + out_p) * f32
            + n_tokens * out_p * o_bytes
        ),
    )

    vmem_limit = int(min(vmem_budget,
                         max(int(vmem_needed(TH) * 1.25) + (4 << 20), 16 << 20)))

    # Index maps: literally constant when the hidden grid collapses, so the
    # weights are fetched exactly once (resident).
    if nk == 1:
        w1_map = lambda i, k: (0, 0)
        b1_map = lambda i, k: (0, 0)
        w2_map = lambda i, k: (0, 0)
    else:
        w1_map = lambda i, k: (0, k)
        b1_map = lambda i, k: (0, k)
        w2_map = lambda i, k: (k, 0)

    def build_and_call(single_buffer_resident):
        def mode(is_resident):
            if single_buffer_resident and is_resident:
                return dict(pipeline_mode=pl.Buffered(1))
            return {}

        in_specs = [
            pl.BlockSpec((TM, in_p), lambda i, k: (i, 0)),            # x (streamed)
            pl.BlockSpec((in_p, TH), w1_map, **mode(nk == 1)),        # w1
            pl.BlockSpec((1, TH), b1_map, **mode(nk == 1)),           # b1 (f32)
            pl.BlockSpec((TH, out_p), w2_map, **mode(nk == 1)),       # w2
            pl.BlockSpec((1, out_p), lambda i, k: (0, 0), **mode(True)),  # b2 (f32)
        ]
        return pl.pallas_call(
            _mlp_kernel,
            out_shape=jax.ShapeDtypeStruct((n_tokens, out_p), out_dtype),
            grid=(gi, nk),
            in_specs=in_specs,
            out_specs=pl.BlockSpec((TM, out_p), lambda i, k: (i, 0)),
            scratch_shapes=[pltpu.VMEM((TM, out_p), jnp.float32)],
            compiler_params=pltpu.CompilerParams(
                dimension_semantics=("parallel", "arbitrary"),
                vmem_limit_bytes=vmem_limit,
            ),
            cost_estimate=cost,
        )(x_p, w1_p, b1_p, w2_p, b2_p)

    try:
        # Single-buffer the constant-index (resident) operands: halves the
        # VMEM reserved for weights when they are resident.
        out = build_and_call(True)
    except Exception:
        # Older jax without pipeline_mode / Buffered(1): default buffering.
        out = build_and_call(False)

    if out_p != out_features:
        out = out[:, :out_features]
    return out.reshape(*lead, out_features)


def init_mlp_params(key, in_features, hidden_features, out_features, dtype=jnp.float32):
    """Deterministic init mimicking nn.Linear's uniform(-1/sqrt(fan_in), 1/sqrt(fan_in))."""
    k1, k2, k3, k4 = jax.random.split(key, 4)
    lim1 = 1.0 / math.sqrt(in_features)
    lim2 = 1.0 / math.sqrt(hidden_features)
    # Stored already-transposed relative to PyTorch, i.e. (in, out) layout.
    w1 = jax.random.uniform(k1, (in_features, hidden_features), dtype, -lim1, lim1)
    b1 = jax.random.uniform(k2, (hidden_features,), dtype, -lim1, lim1)
    w2 = jax.random.uniform(k3, (hidden_features, out_features), dtype, -lim2, lim2)
    b2 = jax.random.uniform(k4, (out_features,), dtype, -lim2, lim2)
    return w1, b1, w2, b2


if __name__ == "__main__":
    key = jax.random.PRNGKey(0)
    kx, kp = jax.random.split(key)

    batch, seq, in_features = 2, 8, 32
    hidden_features = 64
    out_features = in_features  # module default: out_features or in_features

    x = jax.random.normal(kx, (batch, seq, in_features), dtype=jnp.float32)
    w1, b1, w2, b2 = init_mlp_params(kp, in_features, hidden_features, out_features)

    y = mlp_pallas(x, w1, b1, w2, b2)
    jax.block_until_ready(y)

    # Reference in plain JAX with the same bf16-matmul / f32-accumulate recipe.
    xb = x.reshape(-1, in_features).astype(jnp.bfloat16)
    h_ref = jnp.dot(xb, w1.astype(jnp.bfloat16), preferred_element_type=jnp.float32) + b1
    h_ref = 0.5 * h_ref * (1.0 + jax.lax.erf(h_ref * _INV_SQRT2))
    y_ref = jnp.dot(h_ref.astype(jnp.bfloat16), w2.astype(jnp.bfloat16),
                    preferred_element_type=jnp.float32) + b2
    y_ref = y_ref.reshape(batch, seq, out_features)

    assert y.shape == (batch, seq, out_features)
    assert y.dtype == x.dtype
    err = float(jnp.max(jnp.abs(y - y_ref)))
    assert jnp.allclose(y, y_ref, atol=2e-2, rtol=2e-2), err

    print("KERNEL_OK")
</pallas_src>

<mosaic_0001>
module attributes {stable_mosaic.version = 11 : i64} {
  func.func @_mlp_kernel(%arg0: i32, %arg1: i32, %arg2: memref<16x128xf32, #tpu.memory_space<vmem>>, %arg3: memref<128x128xbf16, #tpu.memory_space<vmem>>, %arg4: memref<1x128xf32, #tpu.memory_space<vmem>>, %arg5: memref<128x128xbf16, #tpu.memory_space<vmem>>, %arg6: memref<1x128xf32, #tpu.memory_space<vmem>>, %arg7: memref<16x128xf32, #tpu.memory_space<vmem>>, %arg8: memref<16x128xf32, #tpu.memory_space<vmem>>) attributes {dimension_semantics = [#tpu.dimension_semantics<parallel>, #tpu.dimension_semantics<arbitrary>], iteration_bounds = array<i64: 1, 1>, scalar_prefetch = 0 : i64, scratch_operands = 1 : i64, tpu.core_type = #tpu.core_type<tc>, window_params = [{transform_indices = @transform_0, window_bounds = array<i64: 16, 128>}, {pipeline_mode = #tpu.pipeline_mode<synchronous>, transform_indices = @transform_1, window_bounds = array<i64: 128, 128>}, {pipeline_mode = #tpu.pipeline_mode<synchronous>, transform_indices = @transform_2, window_bounds = array<i64: 1, 128>}, {pipeline_mode = #tpu.pipeline_mode<synchronous>, transform_indices = @transform_3, window_bounds = array<i64: 128, 128>}, {pipeline_mode = #tpu.pipeline_mode<synchronous>, transform_indices = @transform_4, window_bounds = array<i64: 1, 128>}, {transform_indices = @transform_5, window_bounds = array<i64: 16, 128>}]} {
    %c0 = arith.constant 0 : index
    %c0_0 = arith.constant 0 : index
    %0 = vector.load %arg2[%c0, %c0_0] : memref<16x128xf32, #tpu.memory_space<vmem>>, vector<16x128xf32>
    %1 = arith.truncf %0 : vector<16x128xf32> to vector<16x128xbf16>
    %c0_1 = arith.constant 0 : index
    %c0_2 = arith.constant 0 : index
    %2 = vector.load %arg3[%c0_1, %c0_2] : memref<128x128xbf16, #tpu.memory_space<vmem>>, vector<128x128xbf16>
    %cst = arith.constant dense<0.000000e+00> : vector<16x128xf32>
    %3 = tpu.matmul %1, %2, %cst {dimension_numbers = #tpu.dot_dimension_numbers<[1], [0], [0], [1], [0, 0, 1, 1], [], []>} : vector<16x128xbf16>, vector<128x128xbf16>, vector<16x128xf32> -> vector<16x128xf32>
    %c0_3 = arith.constant 0 : index
    %c0_4 = arith.constant 0 : index
    %4 = vector.load %arg4[%c0_3, %c0_4] : memref<1x128xf32, #tpu.memory_space<vmem>>, vector<1x128xf32>
    %5 = vector.broadcast %4 : vector<1x128xf32> to vector<16x128xf32>
    %6 = arith.addf %3, %5 : vector<16x128xf32>
    %cst_5 = arith.constant 5.000000e-01 : f32
    %7 = vector.broadcast %cst_5 : f32 to vector<16x128xf32>
    %8 = arith.mulf %7, %6 : vector<16x128xf32>
    %cst_6 = arith.constant 0.707106769 : f32
    %9 = vector.broadcast %cst_6 : f32 to vector<16x128xf32>
    %10 = arith.mulf %6, %9 : vector<16x128xf32>
    %11 = math.erf %10 : vector<16x128xf32>
    %cst_7 = arith.constant 1.000000e+00 : f32
    %12 = vector.broadcast %cst_7 : f32 to vector<16x128xf32>
    %13 = arith.addf %12, %11 : vector<16x128xf32>
    %14 = arith.mulf %8, %13 : vector<16x128xf32>
    %15 = arith.truncf %14 : vector<16x128xf32> to vector<16x128xbf16>
    %c0_8 = arith.constant 0 : index
    %c0_9 = arith.constant 0 : index
    %16 = vector.load %arg5[%c0_8, %c0_9] : memref<128x128xbf16, #tpu.memory_space<vmem>>, vector<128x128xbf16>
    %cst_10 = arith.constant dense<0.000000e+00> : vector<16x128xf32>
    %17 = tpu.matmul %15, %16, %cst_10 {dimension_numbers = #tpu.dot_dimension_numbers<[1], [0], [0], [1], [0, 0, 1, 1], [], []>} : vector<16x128xbf16>, vector<128x128xbf16>, vector<16x128xf32> -> vector<16x128xf32>
    %c0_i32 = arith.constant 0 : i32
    %18 = arith.cmpi eq, %arg1, %c0_i32 : i32
    %19 = arith.extui %18 : i1 to i32
    %c0_i32_11 = arith.constant 0 : i32
    %20 = arith.cmpi ne, %19, %c0_i32_11 : i32
    scf.if %20 {
      %c0_16 = arith.constant 0 : index
      %c0_17 = arith.constant 0 : index
      %27 = vector.load %arg8[%c0_16, %c0_17] : memref<16x128xf32, #tpu.memory_space<vmem>>, vector<16x128xf32>
      tpu.vector_store %arg8[%c0_16, %c0_17], %17 {strides = array<i32>} : memref<16x128xf32, #tpu.memory_space<vmem>>, vector<16x128xf32>,
    } else {
    }
    %c0_i32_12 = arith.constant 0 : i32
    %21 = arith.cmpi sgt, %arg1, %c0_i32_12 : i32
    %22 = arith.extui %21 : i1 to i32
    %c0_i32_13 = arith.constant 0 : i32
    %23 = arith.cmpi ne, %22, %c0_i32_13 : i32
    scf.if %23 {
      %c0_16 = arith.constant 0 : index
      %c0_17 = arith.constant 0 : index
      %27 = vector.load %arg8[%c0_16, %c0_17] : memref<16x128xf32, #tpu.memory_space<vmem>>, vector<16x128xf32>
      %28 = arith.addf %27, %17 : vector<16x128xf32>
      %c0_18 = arith.constant 0 : index
      %c0_19 = arith.constant 0 : index
      %29 = vector.load %arg8[%c0_18, %c0_19] : memref<16x128xf32, #tpu.memory_space<vmem>>, vector<16x128xf32>
      tpu.vector_store %arg8[%c0_18, %c0_19], %28 {strides = array<i32>} : memref<16x128xf32, #tpu.memory_space<vmem>>, vector<16x128xf32>,
    } else {
    }
    %c0_i32_14 = arith.constant 0 : i32
    %24 = arith.cmpi eq, %arg1, %c0_i32_14 : i32
    %25 = arith.extui %24 : i1 to i32
    %c0_i32_15 = arith.constant 0 : i32
    %26 = arith.cmpi ne, %25, %c0_i32_15 : i32
    scf.if %26 {
      %c0_16 = arith.constant 0 : index
      %c0_17 = arith.constant 0 : index
      %27 = vector.load %arg8[%c0_16, %c0_17] : memref<16x128xf32, #tpu.memory_space<vmem>>, vector<16x128xf32>
      %c0_18 = arith.constant 0 : index
      %c0_19 = arith.constant 0 : index
      %28 = vector.load %arg6[%c0_18, %c0_19] : memref<1x128xf32, #tpu.memory_space<vmem>>, vector<1x128xf32>
      %29 = vector.broadcast %28 : vector<1x128xf32> to vector<16x128xf32>
      %30 = arith.addf %27, %29 : vector<16x128xf32>
      %c0_20 = arith.constant 0 : index
      %c0_21 = arith.constant 0 : index
      %31 = vector.load %arg7[%c0_20, %c0_21] : memref<16x128xf32, #tpu.memory_space<vmem>>, vector<16x128xf32>
      tpu.vector_store %arg7[%c0_20, %c0_21], %30 {strides = array<i32>} : memref<16x128xf32, #tpu.memory_space<vmem>>, vector<16x128xf32>,
    } else {
    }
    return
  }
  func.func @transform_0(%arg0: i32, %arg1: i32) -> (i32, i32) {
    %c0_i32 = arith.constant 0 : i32
    %c0_i32_0 = arith.constant 0 : i32
    return %arg0, %c0_i32 : i32, i32
  }
  func.func @transform_1(%arg0: i32, %arg1: i32) -> (i32, i32) {
    %c0_i32 = arith.constant 0 : i32
    %c0_i32_0 = arith.constant 0 : i32
    %c0_i32_1 = arith.constant 0 : i32
    return %c0_i32, %c0_i32_0 : i32, i32
  }
  func.func @transform_2(%arg0: i32, %arg1: i32) -> (i32, i32) {
    %c0_i32 = arith.constant 0 : i32
    %c0_i32_0 = arith.constant 0 : i32
    %c0_i32_1 = arith.constant 0 : i32
    return %c0_i32, %c0_i32_0 : i32, i32
  }
  func.func @transform_3(%arg0: i32, %arg1: i32) -> (i32, i32) {
    %c0_i32 = arith.constant 0 : i32
    %c0_i32_0 = arith.constant 0 : i32
    %c0_i32_1 = arith.constant 0 : i32
    return %c0_i32, %c0_i32_0 : i32, i32
  }
  func.func @transform_4(%arg0: i32, %arg1: i32) -> (i32, i32) {
    %c0_i32 = arith.constant 0 : i32
    %c0_i32_0 = arith.constant 0 : i32
    %c0_i32_1 = arith.constant 0 : i32
    return %c0_i32, %c0_i32_0 : i32, i32
  }
  func.func @transform_5(%arg0: i32, %arg1: i32) -> (i32, i32) {
    %c0_i32 = arith.constant 0 : i32
    %c0_i32_0 = arith.constant 0 : i32
    return %arg0, %c0_i32 : i32, i32
  }
}

module attributes {stable_mosaic.version = 11 : i64} {
  func.func @_mlp_kernel(%arg0: i32, %arg1: i32, %arg2: memref<16x128xf32, #tpu.memory_space<vmem>>, %arg3: memref<128x128xbf16, #tpu.memory_space<vmem>>, %arg4: memref<1x128xf32, #tpu.memory_space<vmem>>, %arg5: memref<128x128xbf16, #tpu.memory_space<vmem>>, %arg6: memref<1x128xf32, #tpu.memory_space<vmem>>, %arg7: memref<16x128xf32, #tpu.memory_space<vmem>>, %arg8: memref<16x128xf32, #tpu.memory_space<vmem>>) attributes {dimension_semantics = [#tpu.dimension_semantics<parallel>, #tpu.dimension_semantics<arbitrary>], iteration_bounds = array<i64: 1, 1>, scalar_prefetch = 0 : i64, scratch_operands = 1 : i64, tpu.core_type = #tpu.core_type<tc>, window_params = [{transform_indices = @transform_0, window_bounds = array<i64: 16, 128>}, {pipeline_mode = #tpu.pipeline_mode<synchronous>, transform_indices = @transform_1, window_bounds = array<i64: 128, 128>}, {pipeline_mode = #tpu.pipeline_mode<synchronous>, transform_indices = @transform_2, window_bounds = array<i64: 1, 128>}, {pipeline_mode = #tpu.pipeline_mode<synchronous>, transform_indices = @transform_3, window_bounds = array<i64: 128, 128>}, {pipeline_mode = #tpu.pipeline_mode<synchronous>, transform_indices = @transform_4, window_bounds = array<i64: 1, 128>}, {transform_indices = @transform_5, window_bounds = array<i64: 16, 128>}]} {
    %c0 = arith.constant 0 : index
    %c0_0 = arith.constant 0 : index
    %0 = vector.load %arg2[%c0, %c0_0] : memref<16x128xf32, #tpu.memory_space<vmem>>, vector<16x128xf32>
    %1 = arith.truncf %0 : vector<16x128xf32> to vector<16x128xbf16>
    %c0_1 = arith.constant 0 : index
    %c0_2 = arith.constant 0 : index
    %2 = vector.load %arg3[%c0_1, %c0_2] : memref<128x128xbf16, #tpu.memory_space<vmem>>, vector<128x128xbf16>
    %cst = arith.constant dense<0.000000e+00> : vector<16x128xf32>
    %3 = tpu.matmul %1, %2, %cst {dimension_numbers = #tpu.dot_dimension_numbers<[1], [0], [0], [1], [0, 0, 1, 1], [], []>} : vector<16x128xbf16>, vector<128x128xbf16>, vector<16x128xf32> -> vector<16x128xf32>
    %c0_3 = arith.constant 0 : index
    %c0_4 = arith.constant 0 : index
    %4 = vector.load %arg4[%c0_3, %c0_4] : memref<1x128xf32, #tpu.memory_space<vmem>>, vector<1x128xf32>
    %5 = vector.broadcast %4 : vector<1x128xf32> to vector<16x128xf32>
    %6 = arith.addf %3, %5 : vector<16x128xf32>
    %cst_5 = arith.constant 5.000000e-01 : f32
    %7 = vector.broadcast %cst_5 : f32 to vector<16x128xf32>
    %8 = arith.mulf %7, %6 : vector<16x128xf32>
    %cst_6 = arith.constant 0.707106769 : f32
    %9 = vector.broadcast %cst_6 : f32 to vector<16x128xf32>
    %10 = arith.mulf %6, %9 : vector<16x128xf32>
    %11 = math.erf %10 : vector<16x128xf32>
    %cst_7 = arith.constant 1.000000e+00 : f32
    %12 = vector.broadcast %cst_7 : f32 to vector<16x128xf32>
    %13 = arith.addf %12, %11 : vector<16x128xf32>
    %14 = arith.mulf %8, %13 : vector<16x128xf32>
    %15 = arith.truncf %14 : vector<16x128xf32> to vector<16x128xbf16>
    %c0_8 = arith.constant 0 : index
    %c0_9 = arith.constant 0 : index
    %16 = vector.load %arg5[%c0_8, %c0_9] : memref<128x128xbf16, #tpu.memory_space<vmem>>, vector<128x128xbf16>
    %cst_10 = arith.constant dense<0.000000e+00> : vector<16x128xf32>
    %17 = tpu.matmul %15, %16, %cst_10 {dimension_numbers = #tpu.dot_dimension_numbers<[1], [0], [0], [1], [0, 0, 1, 1], [], []>} : vector<16x128xbf16>, vector<128x128xbf16>, vector<16x128xf32> -> vector<16x128xf32>
    %c0_i32 = arith.constant 0 : i32
    %18 = arith.cmpi eq, %arg1, %c0_i32 : i32
    %19 = arith.extui %18 : i1 to i32
    %c0_i32_11 = arith.constant 0 : i32
    %20 = arith.cmpi ne, %19, %c0_i32_11 : i32
    scf.if %20 {
      %c0_16 = arith.constant 0 : index
      %c0_17 = arith.constant 0 : index
      %27 = vector.load %arg8[%c0_16, %c0_17] : memref<16x128xf32, #tpu.memory_space<vmem>>, vector<16x128xf32>
      tpu.vector_store %arg8[%c0_16, %c0_17], %17 {strides = array<i32>} : memref<16x128xf32, #tpu.memory_space<vmem>>, vector<16x128xf32>,
    } else {
    }
    %c0_i32_12 = arith.constant 0 : i32
    %21 = arith.cmpi sgt, %arg1, %c0_i32_12 : i32
    %22 = arith.extui %21 : i1 to i32
    %c0_i32_13 = arith.constant 0 : i32
    %23 = arith.cmpi ne, %22, %c0_i32_13 : i32
    scf.if %23 {
      %c0_16 = arith.constant 0 : index
      %c0_17 = arith.constant 0 : index
      %27 = vector.load %arg8[%c0_16, %c0_17] : memref<16x128xf32, #tpu.memory_space<vmem>>, vector<16x128xf32>
      %28 = arith.addf %27, %17 : vector<16x128xf32>
      %c0_18 = arith.constant 0 : index
      %c0_19 = arith.constant 0 : index
      %29 = vector.load %arg8[%c0_18, %c0_19] : memref<16x128xf32, #tpu.memory_space<vmem>>, vector<16x128xf32>
      tpu.vector_store %arg8[%c0_18, %c0_19], %28 {strides = array<i32>} : memref<16x128xf32, #tpu.memory_space<vmem>>, vector<16x128xf32>,
    } else {
    }
    %c0_i32_14 = arith.constant 0 : i32
    %24 = arith.cmpi eq, %arg1, %c0_i32_14 : i32
    %25 = arith.extui %24 : i1 to i32
    %c0_i32_15 = arith.constant 0 : i32
    %26 = arith.cmpi ne, %25, %c0_i32_15 : i32
    scf.if %26 {
      %c0_16 = arith.constant 0 : index
      %c0_17 = arith.constant 0 : index
      %27 = vector.load %arg8[%c0_16, %c0_17] : memref<16x128xf32, #tpu.memory_space<vmem>>, vector<16x128xf32>
      %c0_18 = arith.constant 0 : index
      %c0_19 = arith.constant 0 : index
      %28 = vector.load %arg6[%c0_18, %c0_19] : memref<1x128xf32, #tpu.memory_space<vmem>>, vector<1x128xf32>
      %29 = vector.broadcast %28 : vector<1x128xf32> to vector<16x128xf32>
      %30 = arith.addf %27, %29 : vector<16x128xf32>
      %c0_20 = arith.constant 0 : index
      %c0_21 = arith.constant 0 : index
      %31 = vector.load %arg7[%c0_20, %c0_21] : memref<16x128xf32, #tpu.memory_space<vmem>>, vector<16x128xf32>
      tpu.vector_store %arg7[%c0_20, %c0_21], %30 {strides = array<i32>} : memref<16x128xf32, #tpu.memory_space<vmem>>, vector<16x128xf32>,
    } else {
    }
    return
  }
  func.func @transform_0(%arg0: i32, %arg1: i32) -> (i32, i32) {
    %c0_i32 = arith.constant 0 : i32
    %c0_i32_0 = arith.constant 0 : i32
    return %arg0, %c0_i32 : i32, i32
  }
  func.func @transform_1(%arg0: i32, %arg1: i32) -> (i32, i32) {
    %c0_i32 = arith.constant 0 : i32
    %c0_i32_0 = arith.constant 0 : i32
    %c0_i32_1 = arith.constant 0 : i32
    return %c0_i32, %c0_i32_0 : i32, i32
  }
  func.func @transform_2(%arg0: i32, %arg1: i32) -> (i32, i32) {
    %c0_i32 = arith.constant 0 : i32
    %c0_i32_0 = arith.constant 0 : i32
    %c0_i32_1 = arith.constant 0 : i32
    return %c0_i32, %c0_i32_0 : i32, i32
  }
  func.func @transform_3(%arg0: i32, %arg1: i32) -> (i32, i32) {
    %c0_i32 = arith.constant 0 : i32
    %c0_i32_0 = arith.constant 0 : i32
    %c0_i32_1 = arith.constant 0 : i32
    return %c0_i32, %c0_i32_0 : i32, i32
  }
  func.func @transform_4(%arg0: i32, %arg1: i32) -> (i32, i32) {
    %c0_i32 = arith.constant 0 : i32
    %c0_i32_0 = arith.constant 0 : i32
    %c0_i32_1 = arith.constant 0 : i32
    return %c0_i32, %c0_i32_0 : i32, i32
  }
  func.func @transform_5(%arg0: i32, %arg1: i32) -> (i32, i32) {
    %c0_i32 = arith.constant 0 : i32
    %c0_i32_0 = arith.constant 0 : i32
    return %arg0, %c0_i32 : i32, i32
  }
}

</mosaic_0001>

<llo_original>
// kernel: tpu_custom_call.1
$region0: #{tpu_custom_call.1}
  #allocation0 [shape = 'u32[]', space=smem, size = 0x4, offset = 0x4, fixed_abs, tag = 'smem constant byte address 0x4 - core index']
  #allocation1 [shape = 'u32[144,128]{1,0:T(1,128)}', space=vmem, size = 0x12000, scoped, tag = 'internal scratch']
  #allocation2 [shape = 'f32[16,128]{1,0:T(8,128)}', space=vmem, size = 0x2000, scoped, tag = 'scratch operand']
  %s0 = inlined_call_operand.hbm [shape: f32[16,128], index: 0, kind: input, shape index: {}]
  %s1 = inlined_call_operand.hbm [shape: bf16[128,128], index: 1, kind: input, shape index: {}]
  %s2 = inlined_call_operand.vmem [shape: f32[1,128], index: 2, kind: input, shape index: {}]
  %s3 = inlined_call_operand.hbm [shape: bf16[128,128], index: 3, kind: input, shape index: {}]
  %s4 = inlined_call_operand.vmem [shape: f32[1,128], index: 4, kind: input, shape index: {}]
  %s5 = inlined_call_operand.hbm [shape: f32[16,128], index: 5, kind: output, shape index: {}]
  %s6 = sld [smem:[#allocation0]]
  $region54: #{tpu_custom_call.1} parent=0
    _
  %s8 = ssub.s32 1, %s6
  %s9 = scalar_select 0, %s8, %s6
  $region1: #{tpu_custom_call.1} parent=0
    #allocation3 [shape = 'u8[8192]{0}', space=vmem, size = 0x2000, scoped, tag = 'input window, operand 0, single buffered']
    #allocation4 [shape = 's32[1]{0}', space=sflag, size = 0x4, scoped, tag = 'scoped memory for tpu_custom_call.1']
    #allocation5 [shape = 's32[1]{0}', space=sflag, size = 0x4, scoped, tag = 'scoped memory for tpu_custom_call.1']
    #allocation6 [shape = 'u8[32768]{0}', space=vmem, size = 0x8000, scoped, tag = 'input window, operand 1, single buffered']
    #allocation7 [shape = 's32[1]{0}', space=sflag, size = 0x4, scoped, tag = 'scoped memory for tpu_custom_call.1']
    #allocation8 [shape = 'u8[32768]{0}', space=vmem, size = 0x8000, scoped, tag = 'input window, operand 3, single buffered']
    #allocation9 [shape = 'u8[8192]{0}', space=vmem, size = 0x2000, scoped, tag = 'output window, operand 0, single buffered']
    %10 = vsyncpa [#allocation4], 0
    %11 = vsyncpa [#allocation7], 0
    %12 = vsyncpa [#allocation5], 0
    // Predicated region
    $region2: #{tpu_custom_call.1} parent=1 // pred_check
      _
    $region3: #{tpu_custom_call.1} parent=1 // pred_check_branch
      %14 = sbr.rel (0) target = $region5
    $region4: #{tpu_custom_call.1} parent=1 // pred_region
      %s16 = ssub.s32 256, 256
      %17 = vsyncadd [#allocation4], %s16
      %s18 = sshll.u32 [#allocation3], 4
      %s19 = int_to_ptr.vmem [resolvable:$true] %s18
      %24 = dma.hbm_to_vmem [thread:$0]  %s0, 256, %s19, [#allocation4], 128, 128, 8
    $region5: #{tpu_custom_call.1} parent=1 // pred_fallthru
      _
    // Predicated region
    $region6: #{tpu_custom_call.1} parent=1 // pred_check
      _
    $region7: #{tpu_custom_call.1} parent=1 // pred_check_branch
      %26 = sbr.rel (0) target = $region9
    $region8: #{tpu_custom_call.1} parent=1 // pred_region
      %s28 = ssub.s32 1024, 1024
      %29 = vsyncadd [#allocation7], %s28
      %s30 = sshll.u32 [#allocation6], 4
      %s31 = int_to_ptr.vmem [resolvable:$true] %s30
      %36 = dma.hbm_to_vmem [thread:$0]  %s1, 1024, %s31, [#allocation7], 64, 64, 4
    $region9: #{tpu_custom_call.1} parent=1 // pred_fallthru
      _
    // Predicated region
    $region10: #{tpu_custom_call.1} parent=1 // pred_check
      _
    $region11: #{tpu_custom_call.1} parent=1 // pred_check_branch
      %38 = sbr.rel (0) target = $region13
    $region12: #{tpu_custom_call.1} parent=1 // pred_region
      _
    $region13: #{tpu_custom_call.1} parent=1 // pred_fallthru
      _
    // Predicated region
    $region14: #{tpu_custom_call.1} parent=1 // pred_check
      _
    $region15: #{tpu_custom_call.1} parent=1 // pred_check_branch
      %40 = sbr.rel (0) target = $region17
    $region16: #{tpu_custom_call.1} parent=1 // pred_region
      %s42 = ssub.s32 1024, 1024
      %43 = vsyncadd [#allocation7], %s42
      %s44 = sshll.u32 [#allocation8], 4
      %s45 = int_to_ptr.vmem [resolvable:$true] %s44
      %50 = dma.hbm_to_vmem [thread:$0]  %s3, 1024, %s45, [#allocation7], 64, 64, 4
    $region17: #{tpu_custom_call.1} parent=1 // pred_fallthru
      _
    // Predicated region
    $region18: #{tpu_custom_call.1} parent=1 // pred_check
      _
    $region19: #{tpu_custom_call.1} parent=1 // pred_check_branch
      %52 = sbr.rel (0) target = $region21
    $region20: #{tpu_custom_call.1} parent=1 // pred_region
      _
    $region21: #{tpu_custom_call.1} parent=1 // pred_fallthru
      _
    // Predicated region
    $region22: #{tpu_custom_call.1} parent=1 // pred_check
      _
    $region23: #{tpu_custom_call.1} parent=1 // pred_check_branch
      %54 = sbr.rel (0) target = $region25
    $region24: #{tpu_custom_call.1} parent=1 // pred_region
      %55 = dma.done [#allocation4], 256
    $region25: #{tpu_custom_call.1} parent=1 // pred_fallthru
      _
    // Predicated region
    $region26: #{tpu_custom_call.1} parent=1 // pred_check
      _
    $region27: #{tpu_custom_call.1} parent=1 // pred_check_branch
      %57 = sbr.rel (0) target = $region29
    $region28: #{tpu_custom_call.1} parent=1 // pred_region
      %58 = dma.done [#allocation7], 1024
    $region29: #{tpu_custom_call.1} parent=1 // pred_fallthru
      _
    // Predicated region
    $region30: #{tpu_custom_call.1} parent=1 // pred_check
      _
    $region31: #{tpu_custom_call.1} parent=1 // pred_check_branch
      %60 = sbr.rel (0) target = $region33
    $region32: #{tpu_custom_call.1} parent=1 // pred_region
      %61 = dma.done [#allocation7], 1024
    $region33: #{tpu_custom_call.1} parent=1 // pred_fallthru
      _
    %v63 = vld [vmem:[#allocation3] sm:$0xff]
    %v64 = vld [vmem:[#allocation3 + $0x8] sm:$0xff]
    %v65 = vpack.c.bf16 %v64, %v63
    %v66 = vld [vmem:[#allocation6] sm:$0xf]
    %v67 = vld [vmem:[#allocation6 + $0x4] sm:$0xf]
    %v68 = vld [vmem:[#allocation6 + $0x8] sm:$0xf]
    %v69 = vld [vmem:[#allocation6 + $0xc] sm:$0xf]
    %v70 = vld [vmem:[#allocation6 + $0x10] sm:$0xf]
    %v71 = vld [vmem:[#allocation6 + $0x14] sm:$0xf]
    %v72 = vld [vmem:[#allocation6 + $0x18] sm:$0xf]
    %v73 = vld [vmem:[#allocation6 + $0x1c] sm:$0xf]
    %v74 = vld [vmem:[#allocation6 + $0x20] sm:$0xf]
    %v75 = vld [vmem:[#allocation6 + $0x24] sm:$0xf]
    %v76 = vld [vmem:[#allocation6 + $0x28] sm:$0xf]
    %v77 = vld [vmem:[#allocation6 + $0x2c] sm:$0xf]
    %v78 = vld [vmem:[#allocation6 + $0x30] sm:$0xf]
    %v79 = vld [vmem:[#allocation6 + $0x34] sm:$0xf]
    %v80 = vld [vmem:[#allocation6 + $0x38] sm:$0xf]
    %v81 = vld [vmem:[#allocation6 + $0x3c] sm:$0xf]
    %v82 = vld [vmem:[%s2] sm:$0x1]
    %v84 = vlaneseq
    %v85 = vshrl.u32 %v84, 7
    %v86 = vsub.s32 0, %v85
    %v87 = vrot.slane %v82, %v86
    %v105 = vunpack.c.l.b16 %v66
    %v106 = vunpack.c.l.b16 %v67
    %v107 = vunpack.c.l.b16 %v68
    %v108 = vunpack.c.l.b16 %v69
    %v109 = vunpack.c.l.b16 %v70
    %v110 = vunpack.c.l.b16 %v71
    %v111 = vunpack.c.l.b16 %v72
    %v112 = vunpack.c.l.b16 %v73
    %v113 = vunpack.c.l.b16 %v74
    %v114 = vunpack.c.l.b16 %v75
    %v115 = vunpack.c.l.b16 %v76
    %v116 = vunpack.c.l.b16 %v77
    %v117 = vunpack.c.l.b16 %v78
    %v118 = vunpack.c.l.b16 %v79
    %v119 = vunpack.c.l.b16 %v80
    %v120 = vunpack.c.l.b16 %v81
    %v121 = vpack.c.b16 %v106, %v105
    %v122 = vpack.c.b16 %v108, %v107
    %v123 = vpack.c.b16 %v110, %v109
    %v124 = vpack.c.b16 %v112, %v111
    %v125 = vpack.c.b16 %v114, %v113
    %v126 = vpack.c.b16 %v116, %v115
    %v127 = vpack.c.b16 %v118, %v117
    %v128 = vpack.c.b16 %v120, %v119
    %137 = vmatprep.subr.bf16.mxu0 0
    %138 = vmatpush1.bf16.msra.mxu0 %v121
    %139 = vmatprep.subr.bf16.mxu0 0
    %140 = vmatpush1.bf16.msra.mxu0 %v122
    %141 = vmatprep.subr.bf16.mxu0 0
    %142 = vmatpush1.bf16.msra.mxu0 %v123
    %143 = vmatprep.subr.bf16.mxu0 0
    %144 = vmatpush1.bf16.msra.mxu0 %v124
    %145 = vmatprep.subr.bf16.mxu0 0
    %146 = vmatpush1.bf16.msra.mxu0 %v125
    %147 = vmatprep.subr.bf16.mxu0 0
    %148 = vmatpush1.bf16.msra.mxu0 %v126
    %149 = vmatprep.subr.bf16.mxu0 0
    %150 = vmatpush1.bf16.msra.mxu0 %v127
    %151 = vmatprep.subr.bf16.mxu0 0
    %152 = vmatpush1.bf16.msra.mxu0 %v128
    %153 = vmatprep.subr.bf16.mxu0 0
    %154 = vmatpush1.bf16.msra.mxu0 0
    %155 = vmatprep.subr.bf16.mxu0 0
    %156 = vmatpush1.bf16.msra.mxu0 0
    %157 = vmatprep.subr.bf16.mxu0 0
    %158 = vmatpush1.bf16.msra.mxu0 0
    %159 = vmatprep.subr.bf16.mxu0 0
    %160 = vmatpush1.bf16.msra.mxu0 0
    %161 = vmatprep.subr.bf16.mxu0 0
    %162 = vmatpush1.bf16.msra.mxu0 0
    %163 = vmatprep.subr.bf16.mxu0 0
    %164 = vmatpush1.bf16.msra.mxu0 0
    %165 = vmatprep.subr.bf16.mxu0 0
    %166 = vmatpush1.bf16.msra.mxu0 0
    %167 = vmatprep.subr.bf16.mxu0 0
    %168 = vmatpush1.bf16.msra.mxu0 0
    %169 = vmatprep.mubr.bf16.mxu0 0
    %170 = vmatmul.mubr.bf16.gmra.mrb[0].mxu0 %v65
    %v171 = vpop.f32.mrb[0].mxu0
    %v172 = vadd.f32 %v87, %v171
    %v173 = vpop.f32.mrb[0].mxu0
    %v174 = vpop.f32.mrb[0].mxu0
    %v175 = vadd.f32 %v87, %v174
    %v176 = vpop.f32.mrb[0].mxu0
    %177 = vdwg.mxu0
    %v178 = vmul.f32 %v172, 0.5
    %v179 = vmul.f32 %v175, 0.5
    %v180 = vmul.f32 %v172, 0.70710677
    %v181 = vmul.f32 %v175, 0.70710677
    %v182 = verf.f32.pop %v180
    %v183 = verf.f32.pop %v181
    %v184 = vadd.f32 %v182, 1.0
    %v185 = vadd.f32 %v183, 1.0
    %v186 = vmul.f32 %v178, %v184
    %v187 = vmul.f32 %v179, %v185
    %v188 = vpack.c.bf16 %v187, %v186
    %v189 = vld [vmem:[#allocation8] sm:$0xf]
    %v190 = vld [vmem:[#allocation8 + $0x4] sm:$0xf]
    %v191 = vld [vmem:[#allocation8 + $0x8] sm:$0xf]
    %v192 = vld [vmem:[#allocation8 + $0xc] sm:$0xf]
    %v193 = vld [vmem:[#allocation8 + $0x10] sm:$0xf]
    %v194 = vld [vmem:[#allocation8 + $0x14] sm:$0xf]
    %v195 = vld [vmem:[#allocation8 + $0x18] sm:$0xf]
    %v196 = vld [vmem:[#allocation8 + $0x1c] sm:$0xf]
    %v197 = vld [vmem:[#allocation8 + $0x20] sm:$0xf]
    %v198 = vld [vmem:[#allocation8 + $0x24] sm:$0xf]
    %v199 = vld [vmem:[#allocation8 + $0x28] sm:$0xf]
    %v200 = vld [vmem:[#allocation8 + $0x2c] sm:$0xf]
    %v201 = vld [vmem:[#allocation8 + $0x30] sm:$0xf]
    %v202 = vld [vmem:[#allocation8 + $0x34] sm:$0xf]
    %v203 = vld [vmem:[#allocation8 + $0x38] sm:$0xf]
    %v204 = vld [vmem:[#allocation8 + $0x3c] sm:$0xf]
    %v221 = vunpack.c.l.b16 %v189
    %v222 = vunpack.c.l.b16 %v190
    %v223 = vunpack.c.l.b16 %v191
    %v224 = vunpack.c.l.b16 %v192
    %v225 = vunpack.c.l.b16 %v193
    %v226 = vunpack.c.l.b16 %v194
    %v227 = vunpack.c.l.b16 %v195
    %v228 = vunpack.c.l.b16 %v196
    %v229 = vunpack.c.l.b16 %v197
    %v230 = vunpack.c.l.b16 %v198
    %v231 = vunpack.c.l.b16 %v199
    %v232 = vunpack.c.l.b16 %v200
    %v233 = vunpack.c.l.b16 %v201
    %v234 = vunpack.c.l.b16 %v202
    %v235 = vunpack.c.l.b16 %v203
    %v236 = vunpack.c.l.b16 %v204
    %v237 = vpack.c.b16 %v222, %v221
    %v238 = vpack.c.b16 %v224, %v223
    %v239 = vpack.c.b16 %v226, %v225
    %v240 = vpack.c.b16 %v228, %v227
    %v241 = vpack.c.b16 %v230, %v229
    %v242 = vpack.c.b16 %v232, %v231
    %v243 = vpack.c.b16 %v234, %v233
    %v244 = vpack.c.b16 %v236, %v235
    %253 = vmatprep.subr.bf16.mxu0 0
    %254 = vmatpush1.bf16.msra.mxu0 %v237
    %255 = vmatprep.subr.bf16.mxu0 0
    %256 = vmatpush1.bf16.msra.mxu0 %v238
    %257 = vmatprep.subr.bf16.mxu0 0
    %258 = vmatpush1.bf16.msra.mxu0 %v239
    %259 = vmatprep.subr.bf16.mxu0 0
    %260 = vmatpush1.bf16.msra.mxu0 %v240
    %261 = vmatprep.subr.bf16.mxu0 0
    %262 = vmatpush1.bf16.msra.mxu0 %v241
    %263 = vmatprep.subr.bf16.mxu0 0
    %264 = vmatpush1.bf16.msra.mxu0 %v242
    %265 = vmatprep.subr.bf16.mxu0 0
    %266 = vmatpush1.bf16.msra.mxu0 %v243
    %267 = vmatprep.subr.bf16.mxu0 0
    %268 = vmatpush1.bf16.msra.mxu0 %v244
    %269 = vmatprep.subr.bf16.mxu0 0
    %270 = vmatpush1.bf16.msra.mxu0 0
    %271 = vmatprep.subr.bf16.mxu0 0
    %272 = vmatpush1.bf16.msra.mxu0 0
    %273 = vmatprep.subr.bf16.mxu0 0
    %274 = vmatpush1.bf16.msra.mxu0 0
    %275 = vmatprep.subr.bf16.mxu0 0
    %276 = vmatpush1.bf16.msra.mxu0 0
    %277 = vmatprep.subr.bf16.mxu0 0
    %278 = vmatpush1.bf16.msra.mxu0 0
    %279 = vmatprep.subr.bf16.mxu0 0
    %280 = vmatpush1.bf16.msra.mxu0 0
    %281 = vmatprep.subr.bf16.mxu0 0
    %282 = vmatpush1.bf16.msra.mxu0 0
    %283 = vmatprep.subr.bf16.mxu0 0
    %284 = vmatpush1.bf16.msra.mxu0 0
    %285 = vmatprep.mubr.bf16.mxu0 0
    %286 = vmatmul.mubr.bf16.gmra.mrb[0].mxu0 %v188
    %v287 = vpop.f32.mrb[0].mxu0
    %v288 = vadd.f32 0.0, %v287
    %v289 = vpop.f32.mrb[0].mxu0
    %v290 = vpop.f32.mrb[0].mxu0
    %v291 = vadd.f32 0.0, %v290
    %v292 = vpop.f32.mrb[0].mxu0
    %293 = vdwg.mxu0
    %p294 = scmp.eq.s32.totalorder 0, 0
    // Predicated region
    $region34: #{tpu_custom_call.1} parent=1 // pred_check
      %p295 = pneg %p294
    $region35: #{tpu_custom_call.1} parent=1 // pred_check_branch
      %297 = sbr.rel (%p295) target = $region37
    $region36: #{tpu_custom_call.1} parent=1 // pred_region
      %298 = vst [vmem:[#allocation2] sm:$0xff] %v288
      %299 = vst [vmem:[#allocation2 + $0x8] sm:$0xff] %v291
    $region37: #{tpu_custom_call.1} parent=1 // pred_fallthru
      _
    %p300 = scmp.gt.s32.totalorder 0, 0
    // Predicated region
    $region38: #{tpu_custom_call.1} parent=1 // pred_check
      %p301 = pneg %p300
    $region39: #{tpu_custom_call.1} parent=1 // pred_check_branch
      %303 = sbr.rel (%p301) target = $region41
    $region40: #{tpu_custom_call.1} parent=1 // pred_region
      %v304 = vld [vmem:[#allocation2] sm:$0xff]
      %v305 = vld [vmem:[#allocation2 + $0x8] sm:$0xff]
      %v306 = vadd.f32 %v304, %v288
      %v307 = vadd.f32 %v305, %v291
      %308 = vst [vmem:[#allocation2] sm:$0xff] %v306
      %309 = vst [vmem:[#allocation2 + $0x8] sm:$0xff] %v307
    $region41: #{tpu_custom_call.1} parent=1 // pred_fallthru
      _
    // Predicated region
    $region42: #{tpu_custom_call.1} parent=1 // pred_check
      %p310 = pneg %p294
    $region43: #{tpu_custom_call.1} parent=1 // pred_check_branch
      %312 = sbr.rel (%p310) target = $region45
    $region44: #{tpu_custom_call.1} parent=1 // pred_region
      %v313 = vld [vmem:[#allocation2] sm:$0xff]
      %v314 = vld [vmem:[#allocation2 + $0x8] sm:$0xff]
      %v315 = vld [vmem:[%s4] sm:$0x1]
      %v317 = vlaneseq
      %v318 = vshrl.u32 %v317, 7
      %v319 = vsub.s32 0, %v318
      %v320 = vrot.slane %v315, %v319
      %v322 = vadd.f32 %v313, %v320
      %v323 = vadd.f32 %v314, %v320
      %324 = vst [vmem:[#allocation9] sm:$0xff] %v322
      %325 = vst [vmem:[#allocation9 + $0x8] sm:$0xff] %v323
    $region45: #{tpu_custom_call.1} parent=1 // pred_fallthru
      _
    // Predicated region
    $region46: #{tpu_custom_call.1} parent=1 // pred_check
      _
    $region47: #{tpu_custom_call.1} parent=1 // pred_check_branch
      %327 = sbr.rel (0) target = $region49
    $region48: #{tpu_custom_call.1} parent=1 // pred_region
      %s329 = ssub.s32 256, 256
      %330 = vsyncadd [#allocation5], %s329
      %s331 = sshll.u32 [#allocation9], 4
      %s332 = int_to_ptr.vmem [resolvable:$true] %s331
      %337 = dma.vmem_to_hbm [thread:$0]  %s332, 256, %s5, [#allocation5], 128, 128, 8
    $region49: #{tpu_custom_call.1} parent=1 // pred_fallthru
      _
    // Predicated region
    $region50: #{tpu_custom_call.1} parent=1 // pred_check
      _
    $region51: #{tpu_custom_call.1} parent=1 // pred_check_branch
      %339 = sbr.rel (0) target = $region53
    $region52: #{tpu_custom_call.1} parent=1 // pred_region
      %340 = dma.done [#allocation5], 256
    $region53: #{tpu_custom_call.1} parent=1 // pred_fallthru
      _
    %341 = vsyncpa [#allocation4], 1
    %342 = vsyncpa [#allocation7], 1
    %343 = vsyncpa [#allocation5], 1

// kernel: tpu_custom_call.1
$region0: #{tpu_custom_call.1}
  #allocation0 [shape = 'u32[]', space=smem, size = 0x4, offset = 0x4, fixed_abs, tag = 'smem constant byte address 0x4 - core index']
  #allocation1 [shape = 'u32[144,128]{1,0:T(1,128)}', space=vmem, size = 0x12000, scoped, tag = 'internal scratch']
  #allocation2 [shape = 'f32[16,128]{1,0:T(8,128)}', space=vmem, size = 0x2000, scoped, tag = 'scratch operand']
  %s0 = inlined_call_operand.hbm [shape: f32[16,128], index: 0, kind: input, shape index: {}]
  %s1 = inlined_call_operand.hbm [shape: bf16[128,128], index: 1, kind: input, shape index: {}]
  %s2 = inlined_call_operand.vmem [shape: f32[1,128], index: 2, kind: input, shape index: {}]
  %s3 = inlined_call_operand.hbm [shape: bf16[128,128], index: 3, kind: input, shape index: {}]
  %s4 = inlined_call_operand.vmem [shape: f32[1,128], index: 4, kind: input, shape index: {}]
  %s5 = inlined_call_operand.hbm [shape: f32[16,128], index: 5, kind: output, shape index: {}]
  %s6 = sld [smem:[#allocation0]]
  $region54: #{tpu_custom_call.1} parent=0
    _
  %s8 = ssub.s32 1, %s6
  %s9 = scalar_select 0, %s8, %s6
  $region1: #{tpu_custom_call.1} parent=0
    #allocation3 [shape = 'u8[8192]{0}', space=vmem, size = 0x2000, scoped, tag = 'input window, operand 0, single buffered']
    #allocation4 [shape = 's32[1]{0}', space=sflag, size = 0x4, scoped, tag = 'scoped memory for tpu_custom_call.1']
    #allocation5 [shape = 's32[1]{0}', space=sflag, size = 0x4, scoped, tag = 'scoped memory for tpu_custom_call.1']
    #allocation6 [shape = 'u8[32768]{0}', space=vmem, size = 0x8000, scoped, tag = 'input window, operand 1, single buffered']
    #allocation7 [shape = 's32[1]{0}', space=sflag, size = 0x4, scoped, tag = 'scoped memory for tpu_custom_call.1']
    #allocation8 [shape = 'u8[32768]{0}', space=vmem, size = 0x8000, scoped, tag = 'input window, operand 3, single buffered']
    #allocation9 [shape = 'u8[8192]{0}', space=vmem, size = 0x2000, scoped, tag = 'output window, operand 0, single buffered']
    %10 = vsyncpa [#allocation4], 0
    %11 = vsyncpa [#allocation7], 0
    %12 = vsyncpa [#allocation5], 0
    // Predicated region
    $region2: #{tpu_custom_call.1} parent=1 // pred_check
      _
    $region3: #{tpu_custom_call.1} parent=1 // pred_check_branch
      %14 = sbr.rel (0) target = $region5
    $region4: #{tpu_custom_call.1} parent=1 // pred_region
      %s16 = ssub.s32 256, 256
      %17 = vsyncadd [#allocation4], %s16
      %s18 = sshll.u32 [#allocation3], 4
      %s19 = int_to_ptr.vmem [resolvable:$true] %s18
      %24 = dma.hbm_to_vmem [thread:$0]  %s0, 256, %s19, [#allocation4], 128, 128, 8
    $region5: #{tpu_custom_call.1} parent=1 // pred_fallthru
      _
    // Predicated region
    $region6: #{tpu_custom_call.1} parent=1 // pred_check
      _
    $region7: #{tpu_custom_call.1} parent=1 // pred_check_branch
      %26 = sbr.rel (0) target = $region9
    $region8: #{tpu_custom_call.1} parent=1 // pred_region
      %s28 = ssub.s32 1024, 1024
      %29 = vsyncadd [#allocation7], %s28
      %s30 = sshll.u32 [#allocation6], 4
      %s31 = int_to_ptr.vmem [resolvable:$true] %s30
      %36 = dma.hbm_to_vmem [thread:$0]  %s1, 1024, %s31, [#allocation7], 64, 64, 4
    $region9: #{tpu_custom_call.1} parent=1 // pred_fallthru
      _
    // Predicated region
    $region10: #{tpu_custom_call.1} parent=1 // pred_check
      _
    $region11: #{tpu_custom_call.1} parent=1 // pred_check_branch
      %38 = sbr.rel (0) target = $region13
    $region12: #{tpu_custom_call.1} parent=1 // pred_region
      _
    $region13: #{tpu_custom_call.1} parent=1 // pred_fallthru
      _
    // Predicated region
    $region14: #{tpu_custom_call.1} parent=1 // pred_check
      _
    $region15: #{tpu_custom_call.1} parent=1 // pred_check_branch
      %40 = sbr.rel (0) target = $region17
    $region16: #{tpu_custom_call.1} parent=1 // pred_region
      %s42 = ssub.s32 1024, 1024
      %43 = vsyncadd [#allocation7], %s42
      %s44 = sshll.u32 [#allocation8], 4
      %s45 = int_to_ptr.vmem [resolvable:$true] %s44
      %50 = dma.hbm_to_vmem [thread:$0]  %s3, 1024, %s45, [#allocation7], 64, 64, 4
    $region17: #{tpu_custom_call.1} parent=1 // pred_fallthru
      _
    // Predicated region
    $region18: #{tpu_custom_call.1} parent=1 // pred_check
      _
    $region19: #{tpu_custom_call.1} parent=1 // pred_check_branch
      %52 = sbr.rel (0) target = $region21
    $region20: #{tpu_custom_call.1} parent=1 // pred_region
      _
    $region21: #{tpu_custom_call.1} parent=1 // pred_fallthru
      _
    // Predicated region
    $region22: #{tpu_custom_call.1} parent=1 // pred_check
      _
    $region23: #{tpu_custom_call.1} parent=1 // pred_check_branch
      %54 = sbr.rel (0) target = $region25
    $region24: #{tpu_custom_call.1} parent=1 // pred_region
      %55 = dma.done [#allocation4], 256
    $region25: #{tpu_custom_call.1} parent=1 // pred_fallthru
      _
    // Predicated region
    $region26: #{tpu_custom_call.1} parent=1 // pred_check
      _
    $region27: #{tpu_custom_call.1} parent=1 // pred_check_branch
      %57 = sbr.rel (0) target = $region29
    $region28: #{tpu_custom_call.1} parent=1 // pred_region
      %58 = dma.done [#allocation7], 1024
    $region29: #{tpu_custom_call.1} parent=1 // pred_fallthru
      _
    // Predicated region
    $region30: #{tpu_custom_call.1} parent=1 // pred_check
      _
    $region31: #{tpu_custom_call.1} parent=1 // pred_check_branch
      %60 = sbr.rel (0) target = $region33
    $region32: #{tpu_custom_call.1} parent=1 // pred_region
      %61 = dma.done [#allocation7], 1024
    $region33: #{tpu_custom_call.1} parent=1 // pred_fallthru
      _
    %v63 = vld [vmem:[#allocation3] sm:$0xff]
    %v64 = vld [vmem:[#allocation3 + $0x8] sm:$0xff]
    %v65 = vpack.c.bf16 %v64, %v63
    %v66 = vld [vmem:[#allocation6] sm:$0xf]
    %v67 = vld [vmem:[#allocation6 + $0x4] sm:$0xf]
    %v68 = vld [vmem:[#allocation6 + $0x8] sm:$0xf]
    %v69 = vld [vmem:[#allocation6 + $0xc] sm:$0xf]
    %v70 = vld [vmem:[#allocation6 + $0x10] sm:$0xf]
    %v71 = vld [vmem:[#allocation6 + $0x14] sm:$0xf]
    %v72 = vld [vmem:[#allocation6 + $0x18] sm:$0xf]
    %v73 = vld [vmem:[#allocation6 + $0x1c] sm:$0xf]
    %v74 = vld [vmem:[#allocation6 + $0x20] sm:$0xf]
    %v75 = vld [vmem:[#allocation6 + $0x24] sm:$0xf]
    %v76 = vld [vmem:[#allocation6 + $0x28] sm:$0xf]
    %v77 = vld [vmem:[#allocation6 + $0x2c] sm:$0xf]
    %v78 = vld [vmem:[#allocation6 + $0x30] sm:$0xf]
    %v79 = vld [vmem:[#allocation6 + $0x34] sm:$0xf]
    %v80 = vld [vmem:[#allocation6 + $0x38] sm:$0xf]
    %v81 = vld [vmem:[#allocation6 + $0x3c] sm:$0xf]
    %v82 = vld [vmem:[%s2] sm:$0x1]
    %v84 = vlaneseq
    %v85 = vshrl.u32 %v84, 7
    %v86 = vsub.s32 0, %v85
    %v87 = vrot.slane %v82, %v86
    %v105 = vunpack.c.l.b16 %v66
    %v106 = vunpack.c.l.b16 %v67
    %v107 = vunpack.c.l.b16 %v68
    %v108 = vunpack.c.l.b16 %v69
    %v109 = vunpack.c.l.b16 %v70
    %v110 = vunpack.c.l.b16 %v71
    %v111 = vunpack.c.l.b16 %v72
    %v112 = vunpack.c.l.b16 %v73
    %v113 = vunpack.c.l.b16 %v74
    %v114 = vunpack.c.l.b16 %v75
    %v115 = vunpack.c.l.b16 %v76
    %v116 = vunpack.c.l.b16 %v77
    %v117 = vunpack.c.l.b16 %v78
    %v118 = vunpack.c.l.b16 %v79
    %v119 = vunpack.c.l.b16 %v80
    %v120 = vunpack.c.l.b16 %v81
    %v121 = vpack.c.b16 %v106, %v105
    %v122 = vpack.c.b16 %v108, %v107
    %v123 = vpack.c.b16 %v110, %v109
    %v124 = vpack.c.b16 %v112, %v111
    %v125 = vpack.c.b16 %v114, %v113
    %v126 = vpack.c.b16 %v116, %v115
    %v127 = vpack.c.b16 %v118, %v117
    %v128 = vpack.c.b16 %v120, %v119
    %137 = vmatprep.subr.bf16.mxu0 0
    %138 = vmatpush1.bf16.msra.mxu0 %v121
    %139 = vmatprep.subr.bf16.mxu0 0
    %140 = vmatpush1.bf16.msra.mxu0 %v122
    %141 = vmatprep.subr.bf16.mxu0 0
    %142 = vmatpush1.bf16.msra.mxu0 %v123
    %143 = vmatprep.subr.bf16.mxu0 0
    %144 = vmatpush1.bf16.msra.mxu0 %v124
    %145 = vmatprep.subr.bf16.mxu0 0
    %146 = vmatpush1.bf16.msra.mxu0 %v125
    %147 = vmatprep.subr.bf16.mxu0 0
    %148 = vmatpush1.bf16.msra.mxu0 %v126
    %149 = vmatprep.subr.bf16.mxu0 0
    %150 = vmatpush1.bf16.msra.mxu0 %v127
    %151 = vmatprep.subr.bf16.mxu0 0
    %152 = vmatpush1.bf16.msra.mxu0 %v128
    %153 = vmatprep.subr.bf16.mxu0 0
    %154 = vmatpush1.bf16.msra.mxu0 0
    %155 = vmatprep.subr.bf16.mxu0 0
    %156 = vmatpush1.bf16.msra.mxu0 0
    %157 = vmatprep.subr.bf16.mxu0 0
    %158 = vmatpush1.bf16.msra.mxu0 0
    %159 = vmatprep.subr.bf16.mxu0 0
    %160 = vmatpush1.bf16.msra.mxu0 0
    %161 = vmatprep.subr.bf16.mxu0 0
    %162 = vmatpush1.bf16.msra.mxu0 0
    %163 = vmatprep.subr.bf16.mxu0 0
    %164 = vmatpush1.bf16.msra.mxu0 0
    %165 = vmatprep.subr.bf16.mxu0 0
    %166 = vmatpush1.bf16.msra.mxu0 0
    %167 = vmatprep.subr.bf16.mxu0 0
    %168 = vmatpush1.bf16.msra.mxu0 0
    %169 = vmatprep.mubr.bf16.mxu0 0
    %170 = vmatmul.mubr.bf16.gmra.mrb[0].mxu0 %v65
    %v171 = vpop.f32.mrb[0].mxu0
    %v172 = vadd.f32 %v87, %v171
    %v173 = vpop.f32.mrb[0].mxu0
    %v174 = vpop.f32.mrb[0].mxu0
    %v175 = vadd.f32 %v87, %v174
    %v176 = vpop.f32.mrb[0].mxu0
    %177 = vdwg.mxu0
    %v178 = vmul.f32 %v172, 0.5
    %v179 = vmul.f32 %v175, 0.5
    %v180 = vmul.f32 %v172, 0.70710677
    %v181 = vmul.f32 %v175, 0.70710677
    %v182 = verf.f32.pop %v180
    %v183 = verf.f32.pop %v181
    %v184 = vadd.f32 %v182, 1.0
    %v185 = vadd.f32 %v183, 1.0
    %v186 = vmul.f32 %v178, %v184
    %v187 = vmul.f32 %v179, %v185
    %v188 = vpack.c.bf16 %v187, %v186
    %v189 = vld [vmem:[#allocation8] sm:$0xf]
    %v190 = vld [vmem:[#allocation8 + $0x4] sm:$0xf]
    %v191 = vld [vmem:[#allocation8 + $0x8] sm:$0xf]
    %v192 = vld [vmem:[#allocation8 + $0xc] sm:$0xf]
    %v193 = vld [vmem:[#allocation8 + $0x10] sm:$0xf]
    %v194 = vld [vmem:[#allocation8 + $0x14] sm:$0xf]
    %v195 = vld [vmem:[#allocation8 + $0x18] sm:$0xf]
    %v196 = vld [vmem:[#allocation8 + $0x1c] sm:$0xf]
    %v197 = vld [vmem:[#allocation8 + $0x20] sm:$0xf]
    %v198 = vld [vmem:[#allocation8 + $0x24] sm:$0xf]
    %v199 = vld [vmem:[#allocation8 + $0x28] sm:$0xf]
    %v200 = vld [vmem:[#allocation8 + $0x2c] sm:$0xf]
    %v201 = vld [vmem:[#allocation8 + $0x30] sm:$0xf]
    %v202 = vld [vmem:[#allocation8 + $0x34] sm:$0xf]
    %v203 = vld [vmem:[#allocation8 + $0x38] sm:$0xf]
    %v204 = vld [vmem:[#allocation8 + $0x3c] sm:$0xf]
    %v221 = vunpack.c.l.b16 %v189
    %v222 = vunpack.c.l.b16 %v190
    %v223 = vunpack.c.l.b16 %v191
    %v224 = vunpack.c.l.b16 %v192
    %v225 = vunpack.c.l.b16 %v193
    %v226 = vunpack.c.l.b16 %v194
    %v227 = vunpack.c.l.b16 %v195
    %v228 = vunpack.c.l.b16 %v196
    %v229 = vunpack.c.l.b16 %v197
    %v230 = vunpack.c.l.b16 %v198
    %v231 = vunpack.c.l.b16 %v199
    %v232 = vunpack.c.l.b16 %v200
    %v233 = vunpack.c.l.b16 %v201
    %v234 = vunpack.c.l.b16 %v202
    %v235 = vunpack.c.l.b16 %v203
    %v236 = vunpack.c.l.b16 %v204
    %v237 = vpack.c.b16 %v222, %v221
    %v238 = vpack.c.b16 %v224, %v223
    %v239 = vpack.c.b16 %v226, %v225
    %v240 = vpack.c.b16 %v228, %v227
    %v241 = vpack.c.b16 %v230, %v229
    %v242 = vpack.c.b16 %v232, %v231
    %v243 = vpack.c.b16 %v234, %v233
    %v244 = vpack.c.b16 %v236, %v235
    %253 = vmatprep.subr.bf16.mxu0 0
    %254 = vmatpush1.bf16.msra.mxu0 %v237
    %255 = vmatprep.subr.bf16.mxu0 0
    %256 = vmatpush1.bf16.msra.mxu0 %v238
    %257 = vmatprep.subr.bf16.mxu0 0
    %258 = vmatpush1.bf16.msra.mxu0 %v239
    %259 = vmatprep.subr.bf16.mxu0 0
    %260 = vmatpush1.bf16.msra.mxu0 %v240
    %261 = vmatprep.subr.bf16.mxu0 0
    %262 = vmatpush1.bf16.msra.mxu0 %v241
    %263 = vmatprep.subr.bf16.mxu0 0
    %264 = vmatpush1.bf16.msra.mxu0 %v242
    %265 = vmatprep.subr.bf16.mxu0 0
    %266 = vmatpush1.bf16.msra.mxu0 %v243
    %267 = vmatprep.subr.bf16.mxu0 0
    %268 = vmatpush1.bf16.msra.mxu0 %v244
    %269 = vmatprep.subr.bf16.mxu0 0
    %270 = vmatpush1.bf16.msra.mxu0 0
    %271 = vmatprep.subr.bf16.mxu0 0
    %272 = vmatpush1.bf16.msra.mxu0 0
    %273 = vmatprep.subr.bf16.mxu0 0
    %274 = vmatpush1.bf16.msra.mxu0 0
    %275 = vmatprep.subr.bf16.mxu0 0
    %276 = vmatpush1.bf16.msra.mxu0 0
    %277 = vmatprep.subr.bf16.mxu0 0
    %278 = vmatpush1.bf16.msra.mxu0 0
    %279 = vmatprep.subr.bf16.mxu0 0
    %280 = vmatpush1.bf16.msra.mxu0 0
    %281 = vmatprep.subr.bf16.mxu0 0
    %282 = vmatpush1.bf16.msra.mxu0 0
    %283 = vmatprep.subr.bf16.mxu0 0
    %284 = vmatpush1.bf16.msra.mxu0 0
    %285 = vmatprep.mubr.bf16.mxu0 0
    %286 = vmatmul.mubr.bf16.gmra.mrb[0].mxu0 %v188
    %v287 = vpop.f32.mrb[0].mxu0
    %v288 = vadd.f32 0.0, %v287
    %v289 = vpop.f32.mrb[0].mxu0
    %v290 = vpop.f32.mrb[0].mxu0
    %v291 = vadd.f32 0.0, %v290
    %v292 = vpop.f32.mrb[0].mxu0
    %293 = vdwg.mxu0
    %p294 = scmp.eq.s32.totalorder 0, 0
    // Predicated region
    $region34: #{tpu_custom_call.1} parent=1 // pred_check
      %p295 = pneg %p294
    $region35: #{tpu_custom_call.1} parent=1 // pred_check_branch
      %297 = sbr.rel (%p295) target = $region37
    $region36: #{tpu_custom_call.1} parent=1 // pred_region
      %298 = vst [vmem:[#allocation2] sm:$0xff] %v288
      %299 = vst [vmem:[#allocation2 + $0x8] sm:$0xff] %v291
    $region37: #{tpu_custom_call.1} parent=1 // pred_fallthru
      _
    %p300 = scmp.gt.s32.totalorder 0, 0
    // Predicated region
    $region38: #{tpu_custom_call.1} parent=1 // pred_check
      %p301 = pneg %p300
    $region39: #{tpu_custom_call.1} parent=1 // pred_check_branch
      %303 = sbr.rel (%p301) target = $region41
    $region40: #{tpu_custom_call.1} parent=1 // pred_region
      %v304 = vld [vmem:[#allocation2] sm:$0xff]
      %v305 = vld [vmem:[#allocation2 + $0x8] sm:$0xff]
      %v306 = vadd.f32 %v304, %v288
      %v307 = vadd.f32 %v305, %v291
      %308 = vst [vmem:[#allocation2] sm:$0xff] %v306
      %309 = vst [vmem:[#allocation2 + $0x8] sm:$0xff] %v307
    $region41: #{tpu_custom_call.1} parent=1 // pred_fallthru
      _
    // Predicated region
    $region42: #{tpu_custom_call.1} parent=1 // pred_check
      %p310 = pneg %p294
    $region43: #{tpu_custom_call.1} parent=1 // pred_check_branch
      %312 = sbr.rel (%p310) target = $region45
    $region44: #{tpu_custom_call.1} parent=1 // pred_region
      %v313 = vld [vmem:[#allocation2] sm:$0xff]
      %v314 = vld [vmem:[#allocation2 + $0x8] sm:$0xff]
      %v315 = vld [vmem:[%s4] sm:$0x1]
      %v317 = vlaneseq
      %v318 = vshrl.u32 %v317, 7
      %v319 = vsub.s32 0, %v318
      %v320 = vrot.slane %v315, %v319
      %v322 = vadd.f32 %v313, %v320
      %v323 = vadd.f32 %v314, %v320
      %324 = vst [vmem:[#allocation9] sm:$0xff] %v322
      %325 = vst [vmem:[#allocation9 + $0x8] sm:$0xff] %v323
    $region45: #{tpu_custom_call.1} parent=1 // pred_fallthru
      _
    // Predicated region
    $region46: #{tpu_custom_call.1} parent=1 // pred_check
      _
    $region47: #{tpu_custom_call.1} parent=1 // pred_check_branch
      %327 = sbr.rel (0) target = $region49
    $region48: #{tpu_custom_call.1} parent=1 // pred_region
      %s329 = ssub.s32 256, 256
      %330 = vsyncadd [#allocation5], %s329
      %s331 = sshll.u32 [#allocation9], 4
      %s332 = int_to_ptr.vmem [resolvable:$true] %s331
      %337 = dma.vmem_to_hbm [thread:$0]  %s332, 256, %s5, [#allocation5], 128, 128, 8
    $region49: #{tpu_custom_call.1} parent=1 // pred_fallthru
      _
    // Predicated region
    $region50: #{tpu_custom_call.1} parent=1 // pred_check
      _
    $region51: #{tpu_custom_call.1} parent=1 // pred_check_branch
      %339 = sbr.rel (0) target = $region53
    $region52: #{tpu_custom_call.1} parent=1 // pred_region
      %340 = dma.done [#allocation5], 256
    $region53: #{tpu_custom_call.1} parent=1 // pred_fallthru
      _
    %341 = vsyncpa [#allocation4], 1
    %342 = vsyncpa [#allocation7], 1
    %343 = vsyncpa [#allocation5], 1

</llo_original>
